<compile_context>
chip_gen: v7x
topology: tpu7x:2x2x1
jax: 0.10.0
libtpu: 0.0.40
codegen_flags: <defaults>
</compile_context>

<pallas_src>
import functools

import jax
import jax.numpy as jnp
from jax import lax
from jax.experimental import pallas as pl
from jax.experimental.pallas import tpu as pltpu


def _attn_core_kernel(q_ref, kt_ref, v_ref, wp_ref, bias_ref, o_ref, acc_ref, *,
                      num_heads):
    """One grid step = one (TQ, C) output slab for one batch element.

    q_ref   : (H, TQ, hd) bf16  pre-scaled queries for this tile
    kt_ref  : (H, hd, N)  bf16  keys, pre-transposed (lane-dense along N)
    v_ref   : (H, N, hd)  bf16  values
    wp_ref  : (H, hd, C)  bf16  output-projection weight split per head
    bias_ref: (1, C)      f32   output-projection bias
    o_ref   : (TQ, C)     f32   output slab
    acc_ref : (TQ, C)     f32   VMEM accumulator
    """
    acc_ref[...] = jnp.zeros_like(acc_ref)

    def head_body(h, carry):
        # All matmuls: bf16 operands, f32 accumulation (full MXU rate).
        s = jnp.dot(q_ref[h], kt_ref[h],
                    preferred_element_type=jnp.float32)                  # (TQ, N)
        s = s - jnp.max(s, axis=-1, keepdims=True)
        p = jnp.exp(s)                                                   # EUP
        l = jnp.sum(p, axis=-1, keepdims=True)                           # XLU
        o_h = jnp.dot(p.astype(jnp.bfloat16), v_ref[h],
                      preferred_element_type=jnp.float32)                # (TQ, hd)
        o_h = o_h * (1.0 / l)                                            # exact softmax denom
        # Per-head output projection accumulated into the (TQ, C) slab
        # (avoids an in-kernel concatenate / lane shuffles).
        acc_ref[...] += jnp.dot(o_h.astype(jnp.bfloat16), wp_ref[h],
                                preferred_element_type=jnp.float32)      # (TQ, C)
        return carry

    # fori_loop (not a Python unroll) -> only one head's temporaries live at a time.
    lax.fori_loop(0, num_heads, head_body, 0)

    o_ref[...] = (acc_ref[...] + bias_ref[...]).astype(o_ref.dtype)


def _pad_to(n, m):
    return ((n + m - 1) // m) * m


def _block_bytes(shape, dtype):
    """VMEM bytes of one buffer with (sublane, lane) padding on the last two dims."""
    itemsize = jnp.dtype(dtype).itemsize
    sub_mult = 8 * (4 // itemsize)      # f32 -> 8 rows, bf16 -> 16 rows
    *lead, sub, lane = shape
    elems = 1
    for d in lead:
        elems *= d
    return elems * _pad_to(sub, sub_mult) * _pad_to(lane, 128) * itemsize


def _vmem_estimate(tq, n, c, h, hd):
    bf16, f32 = jnp.bfloat16, jnp.float32
    pipelined = 2 * (                        # double-buffered pipeline blocks
        _block_bytes((h, tq, hd), bf16)      # q tile
        + _block_bytes((h, hd, n), bf16)     # k^T (resident per batch)
        + _block_bytes((h, n, hd), bf16)     # v   (resident per batch)
        + _block_bytes((h, hd, c), bf16)     # Wproj
        + _block_bytes((1, c), f32)          # bias
        + _block_bytes((tq, c), f32))        # out tile
    scratch = _block_bytes((tq, c), f32)     # accumulator
    temps = 2 * _block_bytes((tq, n), f32) + 2 * _block_bytes((tq, hd), f32)
    return pipelined + scratch + temps


def attention_pallas(x, wq, wkv, wp, bp, *, num_heads, qk_scale=None):
    """Forward pass of the PyTorch Attention module.

    x: (B, N, C) f32; wq: (C, C); wkv: (2C, C); wp: (C, C); bp: (C,).
    """
    B, N, C = x.shape
    assert C % num_heads == 0, "dim must be divisible by num_heads"
    head_dim = C // num_heads
    scale = qk_scale if qk_scale is not None else head_dim ** -0.5

    # ---- Full-width Q/K/V projections in XLA (full MXU rate), bf16 in / f32 acc. ----
    x_bf = x.astype(jnp.bfloat16)
    wq_h = wq.reshape(num_heads, head_dim, C).astype(jnp.bfloat16)        # (H, hd, C)
    wk_h = wkv[:C].reshape(num_heads, head_dim, C).astype(jnp.bfloat16)   # (H, hd, C)
    wv_h = wkv[C:].reshape(num_heads, head_dim, C).astype(jnp.bfloat16)   # (H, hd, C)
    wp_h = wp.T.reshape(num_heads, head_dim, C).astype(jnp.bfloat16)      # (H, hd, C_out)
    bias = bp.reshape(1, C).astype(jnp.float32)

    q = (jnp.einsum('bnc,hdc->bhnd', x_bf, wq_h,
                    preferred_element_type=jnp.float32) * scale).astype(jnp.bfloat16)
    kt = jnp.einsum('hdc,bnc->bhdn', wk_h, x_bf,
                    preferred_element_type=jnp.float32).astype(jnp.bfloat16)  # (B,H,hd,N)
    v = jnp.einsum('bnc,hdc->bhnd', x_bf, wv_h,
                   preferred_element_type=jnp.float32).astype(jnp.bfloat16)   # (B,H,N,hd)

    # ---- VMEM-aware query-tile selection and explicit scoped-VMEM budget. ----
    try:
        vmem_cap = int(pltpu.get_tpu_info().vmem_capacity_bytes)
    except Exception:
        vmem_cap = 64 * 1024 * 1024          # conservative (v7x per-TC VMEM)
    tq = None
    for cand in (512, 256, 128):
        if N % cand == 0 and _vmem_estimate(cand, N, C, num_heads, head_dim) <= 0.7 * vmem_cap:
            tq = cand
            break
    if tq is None:
        tq = next((cand for cand in (128, 64, 32, 16, 8) if N % cand == 0), N)
    n_q = N // tq
    vmem_limit = int(min(max(1.25 * _vmem_estimate(tq, N, C, num_heads, head_dim),
                             32 * 1024 * 1024),
                         0.9 * vmem_cap))

    kernel = functools.partial(_attn_core_kernel, num_heads=num_heads)

    return pl.pallas_call(
        kernel,
        out_shape=jax.ShapeDtypeStruct((B, N, C), x.dtype),
        grid_spec=pltpu.PrefetchScalarGridSpec(
            num_scalar_prefetch=0,
            grid=(B, n_q),
            in_specs=[
                pl.BlockSpec((None, num_heads, tq, head_dim),
                             lambda b, i: (b, 0, i, 0)),                 # q (per q-tile)
                pl.BlockSpec((None, num_heads, head_dim, N),
                             lambda b, i: (b, 0, 0, 0)),                 # k^T (resident per batch)
                pl.BlockSpec((None, num_heads, N, head_dim),
                             lambda b, i: (b, 0, 0, 0)),                 # v   (resident per batch)
                pl.BlockSpec((num_heads, head_dim, C),
                             lambda b, i: (0, 0, 0)),                    # Wproj
                pl.BlockSpec((1, C), lambda b, i: (0, 0)),               # proj bias
            ],
            out_specs=pl.BlockSpec((None, tq, C), lambda b, i: (b, i, 0)),
            scratch_shapes=[pltpu.VMEM((tq, C), jnp.float32)],
        ),
        compiler_params=pltpu.CompilerParams(
            dimension_semantics=("parallel", "parallel"),
            vmem_limit_bytes=vmem_limit),
    )(q, kt, v, wp_h, bias)


def attention_reference(x, wq, wkv, wp, bp, *, num_heads):
    """Pure-JAX f32 reference mirroring the PyTorch forward exactly."""
    B, N, C = x.shape
    hd = C // num_heads
    scale = hd ** -0.5
    hp = lax.Precision.HIGHEST
    q = jnp.einsum('bnc,oc->bno', x, wq, precision=hp)
    q = q.reshape(B, N, num_heads, hd).transpose(0, 2, 1, 3)
    kv = jnp.einsum('bnc,oc->bno', x, wkv, precision=hp)
    kv = kv.reshape(B, N, 2, num_heads, hd).transpose(2, 0, 3, 1, 4)
    k, v = kv[0], kv[1]
    attn = jnp.einsum('bhqd,bhkd->bhqk', q, k, precision=hp) * scale
    attn = jax.nn.softmax(attn, axis=-1)
    out = jnp.einsum('bhqk,bhkd->bhqd', attn, v, precision=hp)
    out = out.transpose(0, 2, 1, 3).reshape(B, N, C)
    return jnp.einsum('bnc,oc->bno', out, wp, precision=hp) + bp


if __name__ == "__main__":
    # Small shapes consistent with the module: dim divisible by num_heads.
    B, N, C = 2, 8, 32
    num_heads = 4

    key = jax.random.PRNGKey(0)
    kx, kq, kkv, kp, kb = jax.random.split(key, 5)

    x = jax.random.normal(kx, (B, N, C), dtype=jnp.float32)
    # Deterministic parameter init (roughly nn.Linear's 1/sqrt(fan_in) scale).
    wq = jax.random.normal(kq, (C, C), dtype=jnp.float32) / jnp.sqrt(C)        # q.weight
    wkv = jax.random.normal(kkv, (2 * C, C), dtype=jnp.float32) / jnp.sqrt(C)  # kv.weight
    wp = jax.random.normal(kp, (C, C), dtype=jnp.float32) / jnp.sqrt(C)        # proj.weight
    bp = jax.random.normal(kb, (C,), dtype=jnp.float32) / jnp.sqrt(C)          # proj.bias

    attn_fn = jax.jit(functools.partial(attention_pallas, num_heads=num_heads))
    out = jax.block_until_ready(attn_fn(x, wq, wkv, wp, bp))

    ref = attention_reference(x, wq, wkv, wp, bp, num_heads=num_heads)
    assert out.shape == (B, N, C)
    # bf16 MXU operands (f32 accumulation) vs. the f32 reference -> ~1e-2-level tolerance.
    assert jnp.allclose(out, ref, atol=5e-2, rtol=5e-2), (
        f"mismatch vs reference: max abs err = {jnp.max(jnp.abs(out - ref))}")

    print("KERNEL_OK")
</pallas_src>

<mosaic_0001>
module attributes {stable_mosaic.version = 11 : i64} {
  func.func @_attn_core_kernel(%arg0: i32, %arg1: i32, %arg2: memref<1x4x8x8xbf16, #tpu.memory_space<vmem>>, %arg3: memref<1x4x8x8xbf16, #tpu.memory_space<vmem>>, %arg4: memref<1x4x8x8xbf16, #tpu.memory_space<vmem>>, %arg5: memref<4x8x32xbf16, #tpu.memory_space<vmem>>, %arg6: memref<1x32xf32, #tpu.memory_space<vmem>>, %arg7: memref<1x8x32xf32, #tpu.memory_space<vmem>>, %arg8: memref<8x32xf32, #tpu.memory_space<vmem>>) attributes {dimension_semantics = [#tpu.dimension_semantics<parallel>, #tpu.dimension_semantics<parallel>], iteration_bounds = array<i64: 2, 1>, scalar_prefetch = 0 : i64, scratch_operands = 1 : i64, tpu.core_type = #tpu.core_type<tc>, window_params = [{transform_indices = @transform_0, window_bounds = array<i64: 1, 4, 8, 8>}, {transform_indices = @transform_1, window_bounds = array<i64: 1, 4, 8, 8>}, {transform_indices = @transform_2, window_bounds = array<i64: 1, 4, 8, 8>}, {pipeline_mode = #tpu.pipeline_mode<synchronous>, transform_indices = @transform_3, window_bounds = array<i64: 4, 8, 32>}, {pipeline_mode = #tpu.pipeline_mode<synchronous>, transform_indices = @transform_4, window_bounds = array<i64: 1, 32>}, {transform_indices = @transform_5, window_bounds = array<i64: 1, 8, 32>}]} {
    %cst = arith.constant 0.000000e+00 : f32
    %0 = vector.broadcast %cst : f32 to vector<8x32xf32>
    %c0 = arith.constant 0 : index
    %c0_0 = arith.constant 0 : index
    %1 = vector.load %arg8[%c0, %c0_0] : memref<8x32xf32, #tpu.memory_space<vmem>>, vector<8x32xf32>
    tpu.vector_store %arg8[%c0, %c0_0], %0 {strides = array<i32>} : memref<8x32xf32, #tpu.memory_space<vmem>>, vector<8x32xf32>,
    %c0_i32 = arith.constant 0 : i32
    %c4_i32 = arith.constant 4 : i32
    %2 = arith.addi %c0_i32, %c4_i32 : i32
    %c1_i32 = arith.constant 1 : i32
    scf.for %arg9 = %c0_i32 to %2 step %c1_i32  : i32 {
      %c0_9 = arith.constant 0 : index
      %10 = arith.index_cast %arg9 : i32 to index
      %c0_10 = arith.constant 0 : index
      %c0_11 = arith.constant 0 : index
      %11 = vector.load %arg2[%c0_9, %10, %c0_10, %c0_11] : memref<1x4x8x8xbf16, #tpu.memory_space<vmem>>, vector<1x1x8x8xbf16>
      %12 = vector.shape_cast %11 : vector<1x1x8x8xbf16> to vector<8x8xbf16>
      %c0_12 = arith.constant 0 : index
      %13 = arith.index_cast %arg9 : i32 to index
      %c0_13 = arith.constant 0 : index
      %c0_14 = arith.constant 0 : index
      %14 = vector.load %arg3[%c0_12, %13, %c0_13, %c0_14] : memref<1x4x8x8xbf16, #tpu.memory_space<vmem>>, vector<1x1x8x8xbf16>
      %15 = vector.shape_cast %14 : vector<1x1x8x8xbf16> to vector<8x8xbf16>
      %cst_15 = arith.constant dense<0.000000e+00> : vector<8x8xf32>
      %16 = tpu.matmul %12, %15, %cst_15 {dimension_numbers = #tpu.dot_dimension_numbers<[1], [0], [0], [1], [0, 0, 1, 1], [], []>} : vector<8x8xbf16>, vector<8x8xbf16>, vector<8x8xf32> -> vector<8x8xf32>
      %cst_16 = arith.constant dense<0xFF800000> : vector<8xf32>
      %17 = vector.multi_reduction <maximumf>, %16, %cst_16 [1] : vector<8x8xf32> to vector<8xf32>
      %18 = vector.shape_cast %17 : vector<8xf32> to vector<8x1xf32>
      %19 = vector.broadcast %18 : vector<8x1xf32> to vector<8x8xf32>
      %20 = arith.subf %16, %19 : vector<8x8xf32>
      %21 = math.exp %20 : vector<8x8xf32>
      %cst_17 = arith.constant dense<0.000000e+00> : vector<8xf32>
      %22 = vector.multi_reduction <add>, %21, %cst_17 [1] : vector<8x8xf32> to vector<8xf32>
      %23 = vector.shape_cast %22 : vector<8xf32> to vector<8x1xf32>
      %24 = arith.truncf %21 : vector<8x8xf32> to vector<8x8xbf16>
      %c0_18 = arith.constant 0 : index
      %25 = arith.index_cast %arg9 : i32 to index
      %c0_19 = arith.constant 0 : index
      %c0_20 = arith.constant 0 : index
      %26 = vector.load %arg4[%c0_18, %25, %c0_19, %c0_20] : memref<1x4x8x8xbf16, #tpu.memory_space<vmem>>, vector<1x1x8x8xbf16>
      %27 = vector.shape_cast %26 : vector<1x1x8x8xbf16> to vector<8x8xbf16>
      %cst_21 = arith.constant dense<0.000000e+00> : vector<8x8xf32>
      %28 = tpu.matmul %24, %27, %cst_21 {dimension_numbers = #tpu.dot_dimension_numbers<[1], [0], [0], [1], [0, 0, 1, 1], [], []>} : vector<8x8xbf16>, vector<8x8xbf16>, vector<8x8xf32> -> vector<8x8xf32>
      %cst_22 = arith.constant 1.000000e+00 : f32
      %29 = vector.broadcast %cst_22 : f32 to vector<8x1xf32>
      %30 = arith.divf %29, %23 : vector<8x1xf32>
      %31 = vector.broadcast %30 : vector<8x1xf32> to vector<8x8xf32>
      %32 = arith.mulf %28, %31 : vector<8x8xf32>
      %c0_23 = arith.constant 0 : index
      %c0_24 = arith.constant 0 : index
      %33 = vector.load %arg8[%c0_23, %c0_24] : memref<8x32xf32, #tpu.memory_space<vmem>>, vector<8x32xf32>
      %34 = arith.truncf %32 : vector<8x8xf32> to vector<8x8xbf16>
      %35 = arith.index_cast %arg9 : i32 to index
      %c0_25 = arith.constant 0 : index
      %c0_26 = arith.constant 0 : index
      %36 = vector.load %arg5[%35, %c0_25, %c0_26] : memref<4x8x32xbf16, #tpu.memory_space<vmem>>, vector<1x8x32xbf16>
      %37 = vector.shape_cast %36 : vector<1x8x32xbf16> to vector<8x32xbf16>
      %cst_27 = arith.constant dense<0.000000e+00> : vector<8x32xf32>
      %38 = tpu.matmul %34, %37, %cst_27 {dimension_numbers = #tpu.dot_dimension_numbers<[1], [0], [0], [1], [0, 0, 1, 1], [], []>} : vector<8x8xbf16>, vector<8x32xbf16>, vector<8x32xf32> -> vector<8x32xf32>
      %39 = arith.addf %33, %38 : vector<8x32xf32>
      %c0_28 = arith.constant 0 : index
      %c0_29 = arith.constant 0 : index
      %40 = vector.load %arg8[%c0_28, %c0_29] : memref<8x32xf32, #tpu.memory_space<vmem>>, vector<8x32xf32>
      tpu.vector_store %arg8[%c0_28, %c0_29], %39 {strides = array<i32>} : memref<8x32xf32, #tpu.memory_space<vmem>>, vector<8x32xf32>,
    }
    %c4_i32_1 = arith.constant 4 : i32
    %c0_2 = arith.constant 0 : index
    %c0_3 = arith.constant 0 : index
    %3 = vector.load %arg8[%c0_2, %c0_3] : memref<8x32xf32, #tpu.memory_space<vmem>>, vector<8x32xf32>
    %c0_4 = arith.constant 0 : index
    %c0_5 = arith.constant 0 : index
    %4 = vector.load %arg6[%c0_4, %c0_5] : memref<1x32xf32, #tpu.memory_space<vmem>>, vector<1x32xf32>
    %5 = vector.broadcast %4 : vector<1x32xf32> to vector<8x32xf32>
    %6 = arith.addf %3, %5 : vector<8x32xf32>
    %c0_6 = arith.constant 0 : index
    %c0_7 = arith.constant 0 : index
    %c0_8 = arith.constant 0 : index
    %7 = vector.load %arg7[%c0_6, %c0_7, %c0_8] : memref<1x8x32xf32, #tpu.memory_space<vmem>>, vector<1x8x32xf32>
    %8 = vector.shape_cast %7 : vector<1x8x32xf32> to vector<8x32xf32>
    %9 = vector.shape_cast %6 : vector<8x32xf32> to vector<1x8x32xf32>
    tpu.vector_store %arg7[%c0_6, %c0_7, %c0_8], %9 {strides = array<i32>} : memref<1x8x32xf32, #tpu.memory_space<vmem>>, vector<1x8x32xf32>,
    return
  }
  func.func @transform_0(%arg0: i32, %arg1: i32) -> (i32, i32, i32, i32) {
    %c0_i32 = arith.constant 0 : i32
    %c0_i32_0 = arith.constant 0 : i32
    %c0_i32_1 = arith.constant 0 : i32
    return %arg0, %c0_i32, %arg1, %c0_i32_0 : i32, i32, i32, i32
  }
  func.func @transform_1(%arg0: i32, %arg1: i32) -> (i32, i32, i32, i32) {
    %c0_i32 = arith.constant 0 : i32
    %c0_i32_0 = arith.constant 0 : i32
    %c0_i32_1 = arith.constant 0 : i32
    %c0_i32_2 = arith.constant 0 : i32
    return %arg0, %c0_i32, %c0_i32_0, %c0_i32_1 : i32, i32, i32, i32
  }
  func.func @transform_2(%arg0: i32, %arg1: i32) -> (i32, i32, i32, i32) {
    %c0_i32 = arith.constant 0 : i32
    %c0_i32_0 = arith.constant 0 : i32
    %c0_i32_1 = arith.constant 0 : i32
    %c0_i32_2 = arith.constant 0 : i32
    return %arg0, %c0_i32, %c0_i32_0, %c0_i32_1 : i32, i32, i32, i32
  }
  func.func @transform_3(%arg0: i32, %arg1: i32) -> (i32, i32, i32) {
    %c0_i32 = arith.constant 0 : i32
    %c0_i32_0 = arith.constant 0 : i32
    %c0_i32_1 = arith.constant 0 : i32
    %c0_i32_2 = arith.constant 0 : i32
    return %c0_i32, %c0_i32_0, %c0_i32_1 : i32, i32, i32
  }
  func.func @transform_4(%arg0: i32, %arg1: i32) -> (i32, i32) {
    %c0_i32 = arith.constant 0 : i32
    %c0_i32_0 = arith.constant 0 : i32
    %c0_i32_1 = arith.constant 0 : i32
    return %c0_i32, %c0_i32_0 : i32, i32
  }
  func.func @transform_5(%arg0: i32, %arg1: i32) -> (i32, i32, i32) {
    %c0_i32 = arith.constant 0 : i32
    %c0_i32_0 = arith.constant 0 : i32
    return %arg0, %arg1, %c0_i32 : i32, i32, i32
  }
}

</mosaic_0001>

<llo_original>
// kernel: attention_pallas.1
$region0: #{attention_pallas.1}
  #allocation0 [shape = 'u32[]', space=smem, size = 0x4, offset = 0x4, fixed_abs, tag = 'smem constant byte address 0x4 - core index']
  #allocation1 [shape = 'u32[144,128]{1,0:T(1,128)}', space=vmem, size = 0x12000, scoped, tag = 'internal scratch']
  #allocation2 [shape = 'f32[8,32]{1,0:T(8,128)}', space=vmem, size = 0x1000, scoped, tag = 'scratch operand']
  %s0 = inlined_call_operand.vmem [shape: bf16[2,4,8,8], index: 0, kind: input, shape index: {}]
  %s1 = inlined_call_operand.vmem [shape: bf16[2,4,8,8], index: 1, kind: input, shape index: {}]
  %s2 = inlined_call_operand.vmem [shape: bf16[2,4,8,8], index: 2, kind: input, shape index: {}]
  %s3 = inlined_call_operand.vmem [shape: bf16[4,8,32], index: 3, kind: input, shape index: {}]
  %s4 = inlined_call_operand.vmem [shape: f32[1,32], index: 4, kind: input, shape index: {}]
  %s5 = inlined_call_operand.hbm [shape: f32[2,8,32], index: 5, kind: output, shape index: {}]
  %s6 = sld [smem:[#allocation0]]
  $region60: #{attention_pallas.1} parent=0
    _
  %s8 = ssub.s32 1, %s6
  %s9 = scalar_select 0, %s8, %s6
  $region1: #{attention_pallas.1} parent=0
    #allocation3 [shape = 'u8[8192]{0}', space=vmem, size = 0x2000, scoped, tag = 'output window, operand 0']
    #allocation4 [shape = 's32[2]{0}', space=sflag, size = 0x8, scoped, tag = 'scoped memory for attention_pallas.1']
    %10 = vsyncpa [#allocation4], 0
    %s11 = scalar_lea.sflag [#allocation4], 1
    %12 = vsyncpa %s11, 0
    loop: start=0, step=1, limit=4
    $region2: #{attention_pallas.1} parent=1 // loop_pre_header
      _
    $region3: #{attention_pallas.1} parent=1 // loop_header
      %s14 = sphi 0, %s18
      %p15 = scmp.ge.s32.totalorder %s14, 4
      %s21 = sphi 0, %s33
      %s22 = sphi 0, %s29
      %s23 = sphi 0, %s21
      %s24 = sphi 0, %s22
      %s25 = sphi 0, %s23
      %s26 = sphi 0, %s24
      %s38 = sphi 0, %s40
      %s41 = sphi 0, %s38
      %s42 = sphi 0, %s41
      %s58 = sphi 0, %s42
      %s64 = sphi 0, %s66
      %s67 = sphi 0, %s64
      %s68 = sphi 0, %s67
      %s84 = sphi 0, %s68
      %s90 = sphi 0, %s92
      %s93 = sphi 0, %s90
      %s94 = sphi 0, %s93
      %s110 = sphi 0, %s94
      %s114 = sphi 0, %s114
      %s116 = sphi 0, %s114
      %s117 = sphi 0, %s116
      %s131 = sphi 0, %s117
      %s135 = sphi 0, %s135
      %s137 = sphi 0, %s135
      %s138 = sphi 0, %s137
      %s152 = sphi 0, %s138
      %s160 = sphi 0, %s162
      %s163 = sphi 0, %s160
      %s164 = sphi 0, %s163
      %s180 = sphi 0, %s164
    $region4: #{attention_pallas.1} parent=1 // loop_header_branch
      %17 = sbr.rel (%p15) target = $region8
    $region5: #{attention_pallas.1} parent=1 // loop_body
      %s19 = ssub.s32 %s14, 1
      %s20 = ssub.s32 %s14, 2
      %s27 = sadd.s32 1, %s22
      %p28 = scmp.ge.s32.totalorder %s27, 1
      %s29 = scalar_select %p28, 0, %s27
      %s30 = sadd.s32 1, %s21
      %s31 = scalar_select %p28, %s30, %s21
      %p32 = scmp.ge.s32.totalorder %s31, 2
      %s33 = scalar_select %p32, 0, %s31
      %s34 = ssub.s32 %s21, %s33
      %s35 = ssub.s32 %s22, %s29
      %s36 = sor.u32 %s34, %s35
      %p37 = scmp.eq.s32.totalorder %s36, 0
      %s39 = sadd.s32 %s38, 1
      %s40 = scalar_select %p37, %s38, %s39
      %p43 = pneg %p37
      %p44 = scmp.eq.s32.totalorder %s14, 1
      %p45 = por %p43, %p44
      %p46 = scmp.ne.s32.totalorder %s38, %s41
      %p47 = scmp.eq.s32.totalorder %s14, 0
      %p48 = por %p46, %p47
      %p49 = scmp.ne.s32.totalorder %s38, %s41
      %p50 = scmp.eq.s32.totalorder %s19, 1
      %p51 = por %p49, %p50
      %p52 = scmp.ne.s32.totalorder %s41, %s42
      %p53 = scmp.eq.s32.totalorder %s19, 0
      %p54 = por %p52, %p53
      %p55 = scmp.ne.s32.totalorder %s41, %s42
      %p56 = scmp.eq.s32.totalorder %s20, 1
      %p57 = por %p55, %p56
      %p59 = scmp.ne.s32.totalorder %s42, %s58
      %p60 = scmp.eq.s32.totalorder %s20, 0
      %p61 = por %p59, %p60
      %s62 = ssub.s32 %s21, %s33
      %p63 = scmp.eq.s32.totalorder %s62, 0
      %s65 = sadd.s32 %s64, 1
      %s66 = scalar_select %p63, %s64, %s65
      %p69 = pneg %p63
      %p70 = scmp.eq.s32.totalorder %s14, 1
      %p71 = por %p69, %p70
      %p72 = scmp.ne.s32.totalorder %s64, %s67
      %p73 = scmp.eq.s32.totalorder %s14, 0
      %p74 = por %p72, %p73
      %p75 = scmp.ne.s32.totalorder %s64, %s67
      %p76 = scmp.eq.s32.totalorder %s19, 1
      %p77 = por %p75, %p76
      %p78 = scmp.ne.s32.totalorder %s67, %s68
      %p79 = scmp.eq.s32.totalorder %s19, 0
      %p80 = por %p78, %p79
      %p81 = scmp.ne.s32.totalorder %s67, %s68
      %p82 = scmp.eq.s32.totalorder %s20, 1
      %p83 = por %p81, %p82
      %p85 = scmp.ne.s32.totalorder %s68, %s84
      %p86 = scmp.eq.s32.totalorder %s20, 0
      %p87 = por %p85, %p86
      %s88 = ssub.s32 %s21, %s33
      %p89 = scmp.eq.s32.totalorder %s88, 0
      %s91 = sadd.s32 %s90, 1
      %s92 = scalar_select %p89, %s90, %s91
      %p95 = pneg %p89
      %p96 = scmp.eq.s32.totalorder %s14, 1
      %p97 = por %p95, %p96
      %p98 = scmp.ne.s32.totalorder %s90, %s93
      %p99 = scmp.eq.s32.totalorder %s14, 0
      %p100 = por %p98, %p99
      %p101 = scmp.ne.s32.totalorder %s90, %s93
      %p102 = scmp.eq.s32.totalorder %s19, 1
      %p103 = por %p101, %p102
      %p104 = scmp.ne.s32.totalorder %s93, %s94
      %p105 = scmp.eq.s32.totalorder %s19, 0
      %p106 = por %p104, %p105
      %p107 = scmp.ne.s32.totalorder %s93, %s94
      %p108 = scmp.eq.s32.totalorder %s20, 1
      %p109 = por %p107, %p108
      %p111 = scmp.ne.s32.totalorder %s94, %s110
      %p112 = scmp.eq.s32.totalorder %s20, 0
      %p113 = por %p111, %p112
      %s115 = sadd.s32 %s114, 1
      %p118 = scmp.eq.s32.totalorder %s14, 1
      %p119 = scmp.ne.s32.totalorder %s114, %s116
      %p120 = scmp.eq.s32.totalorder %s14, 0
      %p121 = por %p119, %p120
      %p122 = scmp.ne.s32.totalorder %s114, %s116
      %p123 = scmp.eq.s32.totalorder %s19, 1
      %p124 = por %p122, %p123
      %p125 = scmp.ne.s32.totalorder %s116, %s117
      %p126 = scmp.eq.s32.totalorder %s19, 0
      %p127 = por %p125, %p126
      %p128 = scmp.ne.s32.totalorder %s116, %s117
      %p129 = scmp.eq.s32.totalorder %s20, 1
      %p130 = por %p128, %p129
      %p132 = scmp.ne.s32.totalorder %s117, %s131
      %p133 = scmp.eq.s32.totalorder %s20, 0
      %p134 = por %p132, %p133
      %s136 = sadd.s32 %s135, 1
      %p139 = scmp.eq.s32.totalorder %s14, 1
      %p140 = scmp.ne.s32.totalorder %s135, %s137
      %p141 = scmp.eq.s32.totalorder %s14, 0
      %p142 = por %p140, %p141
      %p143 = scmp.ne.s32.totalorder %s135, %s137
      %p144 = scmp.eq.s32.totalorder %s19, 1
      %p145 = por %p143, %p144
      %p146 = scmp.ne.s32.totalorder %s137, %s138
      %p147 = scmp.eq.s32.totalorder %s19, 0
      %p148 = por %p146, %p147
      %p149 = scmp.ne.s32.totalorder %s137, %s138
      %p150 = scmp.eq.s32.totalorder %s20, 1
      %p151 = por %p149, %p150
      %p153 = scmp.ne.s32.totalorder %s138, %s152
      %p154 = scmp.eq.s32.totalorder %s20, 0
      %p155 = por %p153, %p154
      %s156 = ssub.s32 %s21, %s33
      %s157 = ssub.s32 %s22, %s29
      %s158 = sor.u32 %s156, %s157
      %p159 = scmp.eq.s32.totalorder %s158, 0
      %s161 = sadd.s32 %s160, 1
      %s162 = scalar_select %p159, %s160, %s161
      %p165 = pneg %p159
      %p166 = scmp.eq.s32.totalorder %s14, 1
      %p167 = por %p165, %p166
      %p168 = scmp.ne.s32.totalorder %s160, %s163
      %p169 = scmp.eq.s32.totalorder %s14, 0
      %p170 = por %p168, %p169
      %p171 = scmp.ne.s32.totalorder %s160, %s163
      %p172 = scmp.eq.s32.totalorder %s19, 1
      %p173 = por %p171, %p172
      %p174 = scmp.ne.s32.totalorder %s163, %s164
      %p175 = scmp.eq.s32.totalorder %s19, 0
      %p176 = por %p174, %p175
      %p177 = scmp.ne.s32.totalorder %s163, %s164
      %p178 = scmp.eq.s32.totalorder %s20, 1
      %p179 = por %p177, %p178
      %p181 = scmp.ne.s32.totalorder %s164, %s180
      %p182 = scmp.eq.s32.totalorder %s20, 0
      %p183 = por %p181, %p182
      %p184 = scmp.le.s32.totalorder 1, %s14
      %p185 = scmp.lt.s32.totalorder %s14, 3
      %p186 = pnand %p184, %p185
      %p187 = pneg %p186
      // Predicated region
      $region9: #{attention_pallas.1} parent=5 // pred_check
        _
      $region10: #{attention_pallas.1} parent=5 // pred_check_branch
        %189 = sbr.rel (%p186) target = $region12
      $region11: #{attention_pallas.1} parent=5 // pred_region
        %s190 = ssub.s32 %s14, 1
        // Predicated region
        $region13: #{attention_pallas.1} parent=11 // pred_check
          %p191 = pneg %p127
        $region14: #{attention_pallas.1} parent=11 // pred_check_branch
          %193 = sbr.rel (%p191) target = $region16
        $region15: #{attention_pallas.1} parent=11 // pred_region
          _
        $region16: #{attention_pallas.1} parent=11 // pred_fallthru
          _
        // Predicated region
        $region17: #{attention_pallas.1} parent=11 // pred_check
          %p194 = pneg %p148
        $region18: #{attention_pallas.1} parent=11 // pred_check_branch
          %196 = sbr.rel (%p194) target = $region20
        $region19: #{attention_pallas.1} parent=11 // pred_region
          _
        $region20: #{attention_pallas.1} parent=11 // pred_fallthru
          _
      $region12: #{attention_pallas.1} parent=5 // pred_fallthru
        _
      %p197 = scmp.lt.s32.totalorder %s14, 2
      // Predicated region
      $region21: #{attention_pallas.1} parent=5 // pred_check
        %p198 = pneg %p197
      $region22: #{attention_pallas.1} parent=5 // pred_check_branch
        %200 = sbr.rel (%p198) target = $region24
      $region23: #{attention_pallas.1} parent=5 // pred_region
        // Predicated region
        $region25: #{attention_pallas.1} parent=23 // pred_check
          %p201 = pneg %p48
        $region26: #{attention_pallas.1} parent=23 // pred_check_branch
          %203 = sbr.rel (%p201) target = $region28
        $region27: #{attention_pallas.1} parent=23 // pred_region
          %p204 = scmp.lt.s32.totalorder %s21, 1
          %s205 = scalar_select %p204, %s21, 1
          %p206 = scmp.lt.s32.totalorder %s22, 0
          %s207 = scalar_select %p206, %s22, 0
          %s208 = smul.addr %s205, 4
          %s209 = sadd.s32 %s207, %s208
          %s210 = smul.addr %s209, 4
          %s211 = scalar_lea.vmem %s0, %s210
        $region28: #{attention_pallas.1} parent=23 // pred_fallthru
          _
        // Predicated region
        $region29: #{attention_pallas.1} parent=23 // pred_check
          %p212 = pneg %p74
        $region30: #{attention_pallas.1} parent=23 // pred_check_branch
          %214 = sbr.rel (%p212) target = $region32
        $region31: #{attention_pallas.1} parent=23 // pred_region
          %p215 = scmp.lt.s32.totalorder %s21, 1
          %s216 = scalar_select %p215, %s21, 1
          %s217 = smul.addr %s216, 4
          %s218 = smul.addr %s217, 4
          %s219 = scalar_lea.vmem %s1, %s218
        $region32: #{attention_pallas.1} parent=23 // pred_fallthru
          _
        // Predicated region
        $region33: #{attention_pallas.1} parent=23 // pred_check
          %p220 = pneg %p100
        $region34: #{attention_pallas.1} parent=23 // pred_check_branch
          %222 = sbr.rel (%p220) target = $region36
        $region35: #{attention_pallas.1} parent=23 // pred_region
          %p223 = scmp.lt.s32.totalorder %s21, 1
          %s224 = scalar_select %p223, %s21, 1
          %s225 = smul.addr %s224, 4
          %s226 = smul.addr %s225, 4
          %s227 = scalar_lea.vmem %s2, %s226
        $region36: #{attention_pallas.1} parent=23 // pred_fallthru
          _
      $region24: #{attention_pallas.1} parent=5 // pred_fallthru
        _
      %p228 = scmp.le.s32.totalorder 1, %s14
      %p229 = scmp.lt.s32.totalorder %s14, 3
      %p230 = pnand %p228, %p229
      %p231 = pneg %p230
      // Predicated region
      $region37: #{attention_pallas.1} parent=5 // pred_check
        _
      $region38: #{attention_pallas.1} parent=5 // pred_check_branch
        %233 = sbr.rel (%p230) target = $region40
      $region39: #{attention_pallas.1} parent=5 // pred_region
        %s234 = ssub.s32 %s14, 1
        %p235 = scmp.lt.s32.totalorder %s23, 1
        %s236 = scalar_select %p235, %s23, 1
        %p237 = scmp.lt.s32.totalorder %s24, 0
        %s238 = scalar_select %p237, %s24, 0
        %s239 = smul.addr %s236, 4
        %s240 = sadd.s32 %s238, %s239
        %s241 = smul.addr %s240, 4
        %s242 = scalar_lea.vmem %s0, %s241
        %p243 = pneg %p54
        %p244 = pneg %p51
        %p245 = scmp.lt.s32.totalorder %s23, 1
        %s246 = scalar_select %p245, %s23, 1
        %s247 = smul.addr %s246, 4
        %s248 = smul.addr %s247, 4
        %s249 = scalar_lea.vmem %s1, %s248
        %p250 = pneg %p80
        %p251 = pneg %p77
        %p252 = scmp.lt.s32.totalorder %s23, 1
        %s253 = scalar_select %p252, %s23, 1
        %s254 = smul.addr %s253, 4
        %s255 = smul.addr %s254, 4
        %s256 = scalar_lea.vmem %s2, %s255
        %p257 = pneg %p106
        %p258 = pneg %p103
        %p259 = pneg %p127
        %p260 = pneg %p124
        %p261 = pneg %p148
        %p262 = pneg %p145
        %p263 = pneg %p176
        %p264 = pneg %p173
        %s265 = sand.u32 %s163, 1
        %s266 = scalar_lea.sflag [#allocation4], %s265
        %s267 = sand.u32 %s163, 1
        %s268 = smul.addr %s267, 8
        %s269 = scalar_lea.vmem [#allocation3], %s268
        %p270 = scmp.lt.s32.totalorder %s23, 1
        %s271 = scalar_select %p270, %s23, 1
        %p272 = scmp.lt.s32.totalorder %s24, 0
        %s273 = scalar_select %p272, %s24, 0
        %s274 = smul.addr %s271, 4
        %s275 = sadd.s32 %s273, %s274
        %s276 = smul.addr %s275, 4
        %s277 = scalar_lea.vmem %s0, %s276
        %p278 = scmp.lt.s32.totalorder %s23, 1
        %s279 = scalar_select %p278, %s23, 1
        %s280 = smul.addr %s279, 4
        %s281 = smul.addr %s280, 4
        %s282 = scalar_lea.vmem %s1, %s281
        %p283 = scmp.lt.s32.totalorder %s23, 1
        %s284 = scalar_select %p283, %s23, 1
        %s285 = smul.addr %s284, 4
        %s286 = smul.addr %s285, 4
        %s287 = scalar_lea.vmem %s2, %s286
        %vm289 = vcmask 261120
        %290 = vst.msk [vmem:[#allocation2] sm:$0xff] %vm289, 0.0
        loop: start=0, step=1, limit=4
        $region41: #{attention_pallas.1} parent=39 // loop_pre_header
          _
        $region42: #{attention_pallas.1} parent=39 // loop_header
          %s292 = sphi 0, %s296
          %p293 = scmp.ge.s32.totalorder %s292, 4
        $region43: #{attention_pallas.1} parent=39 // loop_header_branch
          %295 = sbr.rel (%p293) target = $region47
        $region44: #{attention_pallas.1} parent=39 // loop_body
          %s297 = smul.addr %s292, 4
          %s298 = scalar_lea.vmem %s277, %s297
          %v299 = vld [vmem:[%s298] sm:$0xf]
          %s300 = smul.addr %s292, 4
          %s301 = scalar_lea.vmem %s282, %s300
          %v302 = vld [vmem:[%s301] sm:$0xf]
          %vm303 = vcmask 64512
          %v305 = vsel %vm303, %v299, 0
          %vm307 = vcmask 1043456
          %v309 = vsel %vm307, %v302, 0
          %311 = vmatprep.subr.bf16.mxu0 0
          %312 = vmatpush1.bf16.msra.mxu0 %v309
          %313 = vmatprep.subr.bf16.mxu0 0
          %314 = vmatpush1.bf16.msra.mxu0 0
          %315 = vmatprep.subr.bf16.mxu0 0
          %316 = vmatpush1.bf16.msra.mxu0 0
          %317 = vmatprep.subr.bf16.mxu0 0
          %318 = vmatpush1.bf16.msra.mxu0 0
          %319 = vmatprep.subr.bf16.mxu0 0
          %320 = vmatpush1.bf16.msra.mxu0 0
          %321 = vmatprep.subr.bf16.mxu0 0
          %322 = vmatpush1.bf16.msra.mxu0 0
          %323 = vmatprep.subr.bf16.mxu0 0
          %324 = vmatpush1.bf16.msra.mxu0 0
          %325 = vmatprep.subr.bf16.mxu0 0
          %326 = vmatpush1.bf16.msra.mxu0 0
          %327 = vmatprep.subr.bf16.mxu0 0
          %328 = vmatpush1.bf16.msra.mxu0 0
          %329 = vmatprep.subr.bf16.mxu0 0
          %330 = vmatpush1.bf16.msra.mxu0 0
          %331 = vmatprep.subr.bf16.mxu0 0
          %332 = vmatpush1.bf16.msra.mxu0 0
          %333 = vmatprep.subr.bf16.mxu0 0
          %334 = vmatpush1.bf16.msra.mxu0 0
          %335 = vmatprep.subr.bf16.mxu0 0
          %336 = vmatpush1.bf16.msra.mxu0 0
          %337 = vmatprep.subr.bf16.mxu0 0
          %338 = vmatpush1.bf16.msra.mxu0 0
          %339 = vmatprep.subr.bf16.mxu0 0
          %340 = vmatpush1.bf16.msra.mxu0 0
          %341 = vmatprep.subr.bf16.mxu0 0
          %342 = vmatpush1.bf16.msra.mxu0 0
          %343 = vmatprep.mubr.bf16.mxu0 0
          %344 = vmatmul.mubr.bf16.gmra.mrb[0].mxu0 %v305
          %v345 = vpop.f32.mrb[0].mxu0
          %v346 = vadd.f32 0.0, %v345
          %v347 = vpop.f32.mrb[0].mxu0
          %v348 = vpop.f32.mrb[0].mxu0
          %v349 = vpop.f32.mrb[0].mxu0
          %350 = vdwg.mxu0
          %v351 = vsel %vm303, %v346, -inf
          %352 = vmax.xlane.f32.xlu0 %v351
          %v353 = vpop.xlane.xlu0 %352
          %v354 = vsub.f32 %v346, %v353
          %v355 = vmul.f32 %v354, 1.442695
          %v356 = vpow.pop %v355
          %v357 = vsel %vm303, %v356, 0.0
          %358 = vadd.xlane.f32.xlu0 %v357
          %v359 = vpop.xlane.xlu0 %358
          %v360 = vpack.c.bf16 %v356, %v356
          %s361 = smul.addr %s292, 4
          %s362 = scalar_lea.vmem %s287, %s361
          %v363 = vld [vmem:[%s362] sm:$0xf]
          %v365 = vsel %vm303, %v360, 0
          %v368 = vsel %vm307, %v363, 0
          %370 = vmatprep.subr.bf16.mxu0 0
          %371 = vmatpush1.bf16.msra.mxu0 %v368
          %372 = vmatprep.subr.bf16.mxu0 0
          %373 = vmatpush1.bf16.msra.mxu0 0
          %374 = vmatprep.subr.bf16.mxu0 0
          %375 = vmatpush1.bf16.msra.mxu0 0
          %376 = vmatprep.subr.bf16.mxu0 0
          %377 = vmatpush1.bf16.msra.mxu0 0
          %378 = vmatprep.subr.bf16.mxu0 0
          %379 = vmatpush1.bf16.msra.mxu0 0
          %380 = vmatprep.subr.bf16.mxu0 0
          %381 = vmatpush1.bf16.msra.mxu0 0
          %382 = vmatprep.subr.bf16.mxu0 0
          %383 = vmatpush1.bf16.msra.mxu0 0
          %384 = vmatprep.subr.bf16.mxu0 0
          %385 = vmatpush1.bf16.msra.mxu0 0
          %386 = vmatprep.subr.bf16.mxu0 0
          %387 = vmatpush1.bf16.msra.mxu0 0
          %388 = vmatprep.subr.bf16.mxu0 0
          %389 = vmatpush1.bf16.msra.mxu0 0
          %390 = vmatprep.subr.bf16.mxu0 0
          %391 = vmatpush1.bf16.msra.mxu0 0
          %392 = vmatprep.subr.bf16.mxu0 0
          %393 = vmatpush1.bf16.msra.mxu0 0
          %394 = vmatprep.subr.bf16.mxu0 0
          %395 = vmatpush1.bf16.msra.mxu0 0
          %396 = vmatprep.subr.bf16.mxu0 0
          %397 = vmatpush1.bf16.msra.mxu0 0
          %398 = vmatprep.subr.bf16.mxu0 0
          %399 = vmatpush1.bf16.msra.mxu0 0
          %400 = vmatprep.subr.bf16.mxu0 0
          %401 = vmatpush1.bf16.msra.mxu0 0
          %402 = vmatprep.mubr.bf16.mxu0 0
          %403 = vmatmul.mubr.bf16.gmra.mrb[0].mxu0 %v365
          %v404 = vpop.f32.mrb[0].mxu0
          %v405 = vadd.f32 0.0, %v404
          %v406 = vpop.f32.mrb[0].mxu0
          %v407 = vpop.f32.mrb[0].mxu0
          %v408 = vpop.f32.mrb[0].mxu0
          %409 = vdwg.mxu0
          %v410 = vrcp.pop %v359
          %v411 = vmul.f32 1.0, %v410
          %v412 = vmul.f32 %v405, %v411
          %v413 = vld [vmem:[#allocation2] sm:$0xff]
          %v414 = vpack.c.bf16 %v412, %v412
          %s415 = smul.addr %s292, 4
          %s416 = scalar_lea.vmem %s3, %s415
          %v417 = vld [vmem:[%s416] sm:$0xf]
          %v419 = vsel %vm303, %v414, 0
          %v422 = vsel %vm307, %v417, 0
          %424 = vmatprep.subr.bf16.mxu0 0
          %425 = vmatpush1.bf16.msra.mxu0 %v422
          %426 = vmatprep.subr.bf16.mxu0 0
          %427 = vmatpush1.bf16.msra.mxu0 0
          %428 = vmatprep.subr.bf16.mxu0 0
          %429 = vmatpush1.bf16.msra.mxu0 0
          %430 = vmatprep.subr.bf16.mxu0 0
          %431 = vmatpush1.bf16.msra.mxu0 0
          %432 = vmatprep.subr.bf16.mxu0 0
          %433 = vmatpush1.bf16.msra.mxu0 0
          %434 = vmatprep.subr.bf16.mxu0 0
          %435 = vmatpush1.bf16.msra.mxu0 0
          %436 = vmatprep.subr.bf16.mxu0 0
          %437 = vmatpush1.bf16.msra.mxu0 0
          %438 = vmatprep.subr.bf16.mxu0 0
          %439 = vmatpush1.bf16.msra.mxu0 0
          %440 = vmatprep.subr.bf16.mxu0 0
          %441 = vmatpush1.bf16.msra.mxu0 0
          %442 = vmatprep.subr.bf16.mxu0 0
          %443 = vmatpush1.bf16.msra.mxu0 0
          %444 = vmatprep.subr.bf16.mxu0 0
          %445 = vmatpush1.bf16.msra.mxu0 0
          %446 = vmatprep.subr.bf16.mxu0 0
          %447 = vmatpush1.bf16.msra.mxu0 0
          %448 = vmatprep.subr.bf16.mxu0 0
          %449 = vmatpush1.bf16.msra.mxu0 0
          %450 = vmatprep.subr.bf16.mxu0 0
          %451 = vmatpush1.bf16.msra.mxu0 0
          %452 = vmatprep.subr.bf16.mxu0 0
          %453 = vmatpush1.bf16.msra.mxu0 0
          %454 = vmatprep.subr.bf16.mxu0 0
          %455 = vmatpush1.bf16.msra.mxu0 0
          %456 = vmatprep.mubr.bf16.mxu0 0
          %457 = vmatmul.mubr.bf16.gmra.mrb[0].mxu0 %v419
          %v458 = vpop.f32.mrb[0].mxu0
          %v459 = vadd.f32 0.0, %v458
          %v460 = vpop.f32.mrb[0].mxu0
          %v461 = vpop.f32.mrb[0].mxu0
          %v462 = vpop.f32.mrb[0].mxu0
          %463 = vdwg.mxu0
          %v464 = vadd.f32 %v413, %v459
          %465 = vst.msk [vmem:[#allocation2] sm:$0xff] %vm289, %v464
        $region45: #{attention_pallas.1} parent=39 // loop_footer
          %s296 = sadd.s32 1, %s292
        $region46: #{attention_pallas.1} parent=39 // loop_footer_branch
          %291 = sbr.rel target = $region42
        $region47: #{attention_pallas.1} parent=39 // loop_exit
          _
        %v466 = vld [vmem:[#allocation2] sm:$0xff]
        %v467 = vld [vmem:[%s4] sm:$0x1]
        %v469 = vlaneseq
        %v470 = vshrl.u32 %v469, 7
        %v471 = vsub.s32 0, %v470
        %v472 = vrot.slane %v467, %v471
        %v474 = vadd.f32 %v466, %v472
        %475 = vst.msk [vmem:[%s269] sm:$0xff] %vm289, %v474
        %s476 = sand.u32 %s163, 1
        %s477 = scalar_lea.sflag [#allocation4], %s476
        %s478 = sand.u32 %s163, 1
        %s479 = smul.addr %s478, 8
        %s480 = scalar_lea.vmem [#allocation3], %s479
        // Predicated region
        $region48: #{attention_pallas.1} parent=39 // pred_check
          %p481 = pneg %p173
        $region49: #{attention_pallas.1} parent=39 // pred_check_branch
          %483 = sbr.rel (%p481) target = $region51
        $region50: #{attention_pallas.1} parent=39 // pred_region
          %s485 = ssub.s32 128, 128
          %486 = vsyncadd %s477, %s485
          %s487 = sadd.s32 %s24, %s23
          %s488 = smul.addr %s487, 128
          %s489 = scalar_lea.hbm %s5, %s488
          %s491 = sshll.u32 %s480, 4
          %s492 = int_to_ptr.vmem [resolvable:$true] %s491
          %494 = dma.vmem_to_hbm [thread:$0]  %s492, 128, %s489, %s477
        $region51: #{attention_pallas.1} parent=39 // pred_fallthru
          _
      $region40: #{attention_pallas.1} parent=5 // pred_fallthru
        _
      %p495 = scmp.le.s32.totalorder 2, %s14
      // Predicated region
      $region52: #{attention_pallas.1} parent=5 // pred_check
        %p496 = pneg %p495
      $region53: #{attention_pallas.1} parent=5 // pred_check_branch
        %498 = sbr.rel (%p496) target = $region55
      $region54: #{attention_pallas.1} parent=5 // pred_region
        %s499 = ssub.s32 %s14, 2
        // Predicated region
        $region56: #{attention_pallas.1} parent=54 // pred_check
          %p500 = pneg %p179
        $region57: #{attention_pallas.1} parent=54 // pred_check_branch
          %502 = sbr.rel (%p500) target = $region59
        $region58: #{attention_pallas.1} parent=54 // pred_region
          %s503 = sand.u32 %s164, 1
          %s504 = scalar_lea.sflag [#allocation4], %s503
          %s505 = sand.u32 %s164, 1
          %s506 = smul.addr %s505, 8
          %s507 = scalar_lea.vmem [#allocation3], %s506
          %508 = dma.done %s504, 128
        $region59: #{attention_pallas.1} parent=54 // pred_fallthru
          _
      $region55: #{attention_pallas.1} parent=5 // pred_fallthru
        _
    $region6: #{attention_pallas.1} parent=1 // loop_footer
      %s18 = sadd.s32 1, %s14
    $region7: #{attention_pallas.1} parent=1 // loop_footer_branch
      %13 = sbr.rel target = $region3
    $region8: #{attention_pallas.1} parent=1 // loop_exit
      _
    %509 = vsyncpa [#allocation4], 1
    %s510 = scalar_lea.sflag [#allocation4], 1
    %511 = vsyncpa %s510, 1

</llo_original>
